<compile_context>
chip_gen: v7x
topology: tpu7x:2x2x1
jax: 0.10.0
libtpu: 0.0.40
codegen_flags: <defaults>
</compile_context>

<pallas_src>
import functools
import math

import jax
import jax.numpy as jnp
from jax import lax
from jax.experimental import pallas as pl
from jax.experimental.pallas import tpu as pltpu


# ----------------------------- Pallas kernel --------------------------------

def _g2sr_gnn_kernel(step,
                     a_in_ref, a_out_ref, h0_ref,
                     w_edge_ref, w_big_ref, w_hn_ref,
                     b_edge_ref, b_big_ref, b_hn_ref,
                     out_ref):
    """Fused GNN: `step` GRU-style graph-cell iterations over a session tile.

    a_in_ref / a_out_ref : (TB, N, N)  per-session in/out adjacency (bf16)
    h0_ref               : (TB, N, H)  initial hidden rows (f32)
    w_edge_ref           : (H, 2H)     [w_edge_in^T | w_edge_out^T]      (bf16)
    w_big_ref            : (3H, 3H)    stacked gate weights for
                                       X = [agg_in | agg_out | h]        (bf16)
                                       (h-rows of the n-gate column == 0)
    w_hn_ref             : (H, H)      w_hh^T for the "new" gate          (bf16)
    b_edge_ref           : (1, 2H)     fused edge bias                    (f32)
    b_big_ref            : (1, 3H)     folded per-gate bias               (f32)
    b_hn_ref             : (1, H)      b_hh for the "new" gate            (f32)
    """
    TB, N, H = h0_ref.shape
    M = TB * N
    f32 = jnp.float32
    bf16 = jnp.bfloat16

    A_in = a_in_ref[...]          # (TB, N, N) bf16
    A_out = a_out_ref[...]        # (TB, N, N) bf16

    w_edge = w_edge_ref[...]      # (H, 2H)  bf16
    w_big = w_big_ref[...]        # (3H, 3H) bf16
    w_hn = w_hn_ref[...]          # (H, H)   bf16

    # Hoist bias broadcasts out of the unrolled step loop.
    b_edge = jnp.broadcast_to(b_edge_ref[...], (M, 2 * H))   # f32
    b_big = jnp.broadcast_to(b_big_ref[...], (M, 3 * H))     # f32
    b_hn = jnp.broadcast_to(b_hn_ref[...], (M, H))           # f32

    def mm(x, w):
        return jnp.dot(x, w, preferred_element_type=f32)

    # Flat (M, H) view for the Linear matmuls (row-major, N multiple of 8 ->
    # layout-compatible merge of leading dims).
    hf = h0_ref[...].reshape(M, H)                            # f32

    # `step` is a small static Python int: unrolled, recurrence stays resident.
    for _ in range(step):
        # 1) fused edge projection: one matmul, 2H output lanes
        edge = mm(hf.astype(bf16), w_edge) + b_edge           # (M, 2H) f32
        edge3 = edge.reshape(TB, N, 2 * H).astype(bf16)       # (TB, N, 2H)

        # 2) per-session adjacency aggregation (batched matmuls, no block-diag)
        dims = (((2,), (1,)), ((0,), (0,)))
        agg_in = lax.dot_general(A_in, edge3[..., :H], dims,
                                 preferred_element_type=f32)  # (TB, N, H)
        agg_out = lax.dot_general(A_out, edge3[..., H:], dims,
                                  preferred_element_type=f32)  # (TB, N, H)

        # 3) fused gate matmul: [agg_in | agg_out | h] @ (3H, 3H)
        X = jnp.concatenate([agg_in.reshape(M, H).astype(bf16),
                             agg_out.reshape(M, H).astype(bf16),
                             hf.astype(bf16)], axis=-1)        # (M, 3H) bf16
        pre = mm(X, w_big) + b_big                             # (M, 3H) f32

        # 4) reset-gated "new" contribution from h, kept separate
        h_n = mm(hf.astype(bf16), w_hn) + b_hn                 # (M, H) f32

        resetgate = jax.nn.sigmoid(pre[:, :H])
        inputgate = jax.nn.sigmoid(pre[:, H:2 * H])
        newgate = jnp.tanh(pre[:, 2 * H:] + resetgate * h_n)
        hf = newgate + inputgate * (hf - newgate)

    out_ref[...] = hf.reshape(TB, N, H).astype(out_ref.dtype)


# --------------------------- wrapper / packing -------------------------------

def pack_gnn_params(params, H, weight_dtype=jnp.bfloat16):
    """Repack raw GNN parameters into few, fused, bias-folded operands."""
    (w_ein_T, b_ein, w_eout_T, b_eout, b_iah, b_oah,
     w_ih_T, b_ih, w_hh_T, b_hh) = params

    # Fused edge projection weight / bias: (H, 2H), (1, 2H)
    w_edge = jnp.concatenate([w_ein_T, w_eout_T], axis=1)
    b_edge = jnp.concatenate([b_ein, b_eout], axis=1)

    # Stacked gate weight for X = [agg_in | agg_out | h]:
    #   rows 0:H    -> w_ih^T rows for the "in"  half
    #   rows H:2H   -> w_ih^T rows for the "out" half
    #   rows 2H:3H  -> w_hh^T, with the n-gate column zeroed (that term is
    #                  computed separately because it is reset-gated).
    w_hh_gated = w_hh_T.at[:, 2 * H:3 * H].set(0.0)
    w_big = jnp.concatenate([w_ih_T, w_hh_gated], axis=0)     # (3H, 3H)

    w_hn = w_hh_T[:, 2 * H:3 * H]                              # (H, H)
    b_hn = b_hh[:, 2 * H:3 * H]                                # (1, H)

    # Fold b_iah / b_oah (constant rows) through the input-gate weights, and
    # merge b_ih + b_hh for the r/i gates (they are summed before the sigmoid).
    fold = b_iah @ w_ih_T[:H] + b_oah @ w_ih_T[H:2 * H]        # (1, 3H)
    b_big = b_ih + fold
    b_big = b_big.at[:, :2 * H].add(b_hh[:, :2 * H])           # (1, 3H)

    return (w_edge.astype(weight_dtype),
            w_big.astype(weight_dtype),
            w_hn.astype(weight_dtype),
            b_edge.astype(jnp.float32),
            b_big.astype(jnp.float32),
            b_hn.astype(jnp.float32))


def g2sr_gnn_pallas(A, hidden, params, step, sessions_per_block=None):
    """All GNN steps in a single pallas_call with sessions tiled on the grid."""
    B, N, H = hidden.shape

    # Wrapper-side glue: split adjacency halves, cast matmul operands.
    A_in = A[:, :, :N].astype(jnp.bfloat16)                    # (B, N, N)
    A_out = A[:, :, N:2 * N].astype(jnp.bfloat16)              # (B, N, N)
    h0 = hidden.astype(jnp.float32)                            # (B, N, H)

    packed = pack_gnn_params(params, H)
    w_edge, w_big, w_hn, b_edge, b_big, b_hn = packed

    # Sessions per grid step: aim for >=256 matmul rows where B allows.
    if sessions_per_block is None:
        TB = max(1, min(B, 256 // max(N, 1)))
        while B % TB != 0:
            TB -= 1
    else:
        TB = sessions_per_block
    grid = (B // TB,)

    def const_spec(x):
        r = x.ndim
        return pl.BlockSpec(x.shape, lambda i, r=r: (0,) * r)

    in_specs = [
        pl.BlockSpec((TB, N, N), lambda i: (i, 0, 0)),         # A_in
        pl.BlockSpec((TB, N, N), lambda i: (i, 0, 0)),         # A_out
        pl.BlockSpec((TB, N, H), lambda i: (i, 0, 0)),         # h0
        const_spec(w_edge), const_spec(w_big), const_spec(w_hn),
        const_spec(b_edge), const_spec(b_big), const_spec(b_hn),
    ]
    out_spec = pl.BlockSpec((TB, N, H), lambda i: (i, 0, 0))

    out = pl.pallas_call(
        functools.partial(_g2sr_gnn_kernel, step),
        out_shape=jax.ShapeDtypeStruct((B, N, H), jnp.float32),
        grid=grid,
        in_specs=in_specs,
        out_specs=out_spec,
        compiler_params=pltpu.CompilerParams(
            dimension_semantics=("parallel",)),
    )(A_in, A_out, h0, w_edge, w_big, w_hn, b_edge, b_big, b_hn)

    return out


# ------------------------------ G2SR forward ---------------------------------

def g2sr_forward(item_ids, A, embedding, gnn_params, step):
    # Embedding lookup = gather glue, done in plain JAX.
    # TODO(synk): could be fused via PrefetchScalarGridSpec + pl.Element gather.
    hidden = jnp.take(embedding, item_ids, axis=0)             # (B, N, H)
    return g2sr_gnn_pallas(A, hidden, gnn_params, step)


# --------------------------- pure-JAX reference ------------------------------

def gnn_cell_ref(A, hidden, params):
    (w_ein, b_ein, w_eout, b_eout, b_iah, b_oah,
     w_ih, b_ih, w_hh, b_hh) = params
    N = A.shape[1]
    edge_in = hidden @ w_ein + b_ein
    edge_out = hidden @ w_eout + b_eout
    input_in = jnp.matmul(A[:, :, :N], edge_in) + b_iah
    input_out = jnp.matmul(A[:, :, N:2 * N], edge_out) + b_oah
    inputs = jnp.concatenate([input_in, input_out], axis=2)
    gi = inputs @ w_ih + b_ih
    gh = hidden @ w_hh + b_hh
    H = hidden.shape[-1]
    i_r, i_i, i_n = gi[..., :H], gi[..., H:2 * H], gi[..., 2 * H:]
    h_r, h_i, h_n = gh[..., :H], gh[..., H:2 * H], gh[..., 2 * H:]
    resetgate = jax.nn.sigmoid(i_r + h_r)
    inputgate = jax.nn.sigmoid(i_i + h_i)
    newgate = jnp.tanh(i_n + resetgate * h_n)
    return newgate + inputgate * (hidden - newgate)


def g2sr_forward_ref(item_ids, A, embedding, gnn_params, step):
    hidden = jnp.take(embedding, item_ids, axis=0)
    for _ in range(step):
        hidden = gnn_cell_ref(A, hidden, gnn_params)
    return hidden


# ----------------------------------- main ------------------------------------

if __name__ == "__main__":
    # Small config consistent with the module: hiddenSize=32, step=2,
    # n_node=50 items, batch=2 sessions, N=8 unique nodes per session graph.
    B, N, H = 2, 8, 32
    n_node = 50
    step = 2
    stdv = 1.0 / math.sqrt(H)

    key = jax.random.PRNGKey(0)
    keys = jax.random.split(key, 16)

    def unif(k, shape):
        return jax.random.uniform(k, shape, jnp.float32, -stdv, stdv)

    # Parameters (uniform(-stdv, stdv) per reset_parameters); Linear weights
    # are stored pre-transposed to (in_features, out_features).
    embedding = unif(keys[0], (n_node, H))                     # g_embedding.weight
    w_ein_T = unif(keys[1], (H, H))                            # linear_edge_in.weight^T
    b_ein = unif(keys[2], (1, H))
    w_eout_T = unif(keys[3], (H, H))                           # linear_edge_out.weight^T
    b_eout = unif(keys[4], (1, H))
    b_iah = unif(keys[5], (1, H))
    b_oah = unif(keys[6], (1, H))
    w_ih_T = unif(keys[7], (2 * H, 3 * H))                     # w_ih^T
    b_ih = unif(keys[8], (1, 3 * H))
    w_hh_T = unif(keys[9], (H, 3 * H))                         # w_hh^T
    b_hh = unif(keys[10], (1, 3 * H))

    gnn_params = (w_ein_T, b_ein, w_eout_T, b_eout, b_iah, b_oah,
                  w_ih_T, b_ih, w_hh_T, b_hh)

    # Inputs: item ids [B, N] and session adjacency A [B, N, 2N]
    item_ids = jax.random.randint(keys[11], (B, N), 0, n_node)
    A = jax.random.uniform(keys[12], (B, N, 2 * N), jnp.float32, 0.0, 1.0)

    fwd = jax.jit(g2sr_forward, static_argnums=(4,))
    out = fwd(item_ids, A, embedding, gnn_params, step)
    out = jax.block_until_ready(out)

    ref = g2sr_forward_ref(item_ids, A, embedding, gnn_params, step)
    assert out.shape == (B, N, H)
    # bf16 matmul operands (f32 accumulation) -> loosened tolerance vs f32 ref.
    assert jnp.allclose(out, ref, rtol=2e-2, atol=2e-2), "mismatch vs reference"

    print("KERNEL_OK")
</pallas_src>

<mosaic_0001>
module attributes {stable_mosaic.version = 11 : i64} {
  func.func @_g2sr_gnn_kernel(%arg0: i32, %arg1: memref<2x8x8xbf16, #tpu.memory_space<vmem>>, %arg2: memref<2x8x8xbf16, #tpu.memory_space<vmem>>, %arg3: memref<2x8x32xf32, #tpu.memory_space<vmem>>, %arg4: memref<32x64xbf16, #tpu.memory_space<vmem>>, %arg5: memref<96x96xbf16, #tpu.memory_space<vmem>>, %arg6: memref<32x32xbf16, #tpu.memory_space<vmem>>, %arg7: memref<1x64xf32, #tpu.memory_space<vmem>>, %arg8: memref<1x96xf32, #tpu.memory_space<vmem>>, %arg9: memref<1x32xf32, #tpu.memory_space<vmem>>, %arg10: memref<2x8x32xf32, #tpu.memory_space<vmem>>) attributes {dimension_semantics = [#tpu.dimension_semantics<parallel>], iteration_bounds = array<i64: 1>, scalar_prefetch = 0 : i64, scratch_operands = 0 : i64, tpu.core_type = #tpu.core_type<tc>, window_params = [{transform_indices = @transform_0, window_bounds = array<i64: 2, 8, 8>}, {transform_indices = @transform_1, window_bounds = array<i64: 2, 8, 8>}, {transform_indices = @transform_2, window_bounds = array<i64: 2, 8, 32>}, {pipeline_mode = #tpu.pipeline_mode<synchronous>, transform_indices = @transform_3, window_bounds = array<i64: 32, 64>}, {pipeline_mode = #tpu.pipeline_mode<synchronous>, transform_indices = @transform_4, window_bounds = array<i64: 96, 96>}, {pipeline_mode = #tpu.pipeline_mode<synchronous>, transform_indices = @transform_5, window_bounds = array<i64: 32, 32>}, {pipeline_mode = #tpu.pipeline_mode<synchronous>, transform_indices = @transform_6, window_bounds = array<i64: 1, 64>}, {pipeline_mode = #tpu.pipeline_mode<synchronous>, transform_indices = @transform_7, window_bounds = array<i64: 1, 96>}, {pipeline_mode = #tpu.pipeline_mode<synchronous>, transform_indices = @transform_8, window_bounds = array<i64: 1, 32>}, {transform_indices = @transform_9, window_bounds = array<i64: 2, 8, 32>}]} {
    %c0 = arith.constant 0 : index
    %c0_0 = arith.constant 0 : index
    %c0_1 = arith.constant 0 : index
    %0 = vector.load %arg1[%c0, %c0_0, %c0_1] : memref<2x8x8xbf16, #tpu.memory_space<vmem>>, vector<2x8x8xbf16>
    %c0_2 = arith.constant 0 : index
    %c0_3 = arith.constant 0 : index
    %c0_4 = arith.constant 0 : index
    %1 = vector.load %arg2[%c0_2, %c0_3, %c0_4] : memref<2x8x8xbf16, #tpu.memory_space<vmem>>, vector<2x8x8xbf16>
    %c0_5 = arith.constant 0 : index
    %c0_6 = arith.constant 0 : index
    %2 = vector.load %arg4[%c0_5, %c0_6] : memref<32x64xbf16, #tpu.memory_space<vmem>>, vector<32x64xbf16>
    %c0_7 = arith.constant 0 : index
    %c0_8 = arith.constant 0 : index
    %3 = vector.load %arg5[%c0_7, %c0_8] : memref<96x96xbf16, #tpu.memory_space<vmem>>, vector<96x96xbf16>
    %c0_9 = arith.constant 0 : index
    %c0_10 = arith.constant 0 : index
    %4 = vector.load %arg6[%c0_9, %c0_10] : memref<32x32xbf16, #tpu.memory_space<vmem>>, vector<32x32xbf16>
    %c0_11 = arith.constant 0 : index
    %c0_12 = arith.constant 0 : index
    %5 = vector.load %arg7[%c0_11, %c0_12] : memref<1x64xf32, #tpu.memory_space<vmem>>, vector<1x64xf32>
    %6 = vector.shape_cast %5 : vector<1x64xf32> to vector<1x64xf32>
    %7 = vector.broadcast %6 : vector<1x64xf32> to vector<16x64xf32>
    %c0_13 = arith.constant 0 : index
    %c0_14 = arith.constant 0 : index
    %8 = vector.load %arg8[%c0_13, %c0_14] : memref<1x96xf32, #tpu.memory_space<vmem>>, vector<1x96xf32>
    %9 = vector.shape_cast %8 : vector<1x96xf32> to vector<1x96xf32>
    %10 = vector.broadcast %9 : vector<1x96xf32> to vector<16x96xf32>
    %c0_15 = arith.constant 0 : index
    %c0_16 = arith.constant 0 : index
    %11 = vector.load %arg9[%c0_15, %c0_16] : memref<1x32xf32, #tpu.memory_space<vmem>>, vector<1x32xf32>
    %12 = vector.shape_cast %11 : vector<1x32xf32> to vector<1x32xf32>
    %13 = vector.broadcast %12 : vector<1x32xf32> to vector<16x32xf32>
    %c0_17 = arith.constant 0 : index
    %c0_18 = arith.constant 0 : index
    %c0_19 = arith.constant 0 : index
    %14 = vector.load %arg3[%c0_17, %c0_18, %c0_19] : memref<2x8x32xf32, #tpu.memory_space<vmem>>, vector<2x8x32xf32>
    %15 = vector.shape_cast %14 : vector<2x8x32xf32> to vector<16x32xf32>
    %16 = arith.truncf %15 : vector<16x32xf32> to vector<16x32xbf16>
    %cst = arith.constant dense<0.000000e+00> : vector<16x64xf32>
    %17 = tpu.matmul %16, %2, %cst {dimension_numbers = #tpu.dot_dimension_numbers<[1], [0], [0], [1], [0, 0, 1, 1], [], []>} : vector<16x32xbf16>, vector<32x64xbf16>, vector<16x64xf32> -> vector<16x64xf32>
    %18 = arith.addf %17, %7 : vector<16x64xf32>
    %19 = vector.shape_cast %18 : vector<16x64xf32> to vector<2x8x64xf32>
    %20 = arith.truncf %19 : vector<2x8x64xf32> to vector<2x8x64xbf16>
    %21 = vector.extract_strided_slice %20 {offsets = [0, 0, 0], sizes = [2, 8, 32], strides = [1, 1, 1]} : vector<2x8x64xbf16> to vector<2x8x32xbf16>
    %cst_20 = arith.constant dense<0.000000e+00> : vector<2x8x32xf32>
    %22 = tpu.matmul %0, %21, %cst_20 {dimension_numbers = #tpu.dot_dimension_numbers<[2], [1], [1], [2], [0, 0, 0, 1, 1, 2], [0], [0]>} : vector<2x8x8xbf16>, vector<2x8x32xbf16>, vector<2x8x32xf32> -> vector<2x8x32xf32>
    %23 = vector.extract_strided_slice %20 {offsets = [0, 0, 32], sizes = [2, 8, 32], strides = [1, 1, 1]} : vector<2x8x64xbf16> to vector<2x8x32xbf16>
    %cst_21 = arith.constant dense<0.000000e+00> : vector<2x8x32xf32>
    %24 = tpu.matmul %1, %23, %cst_21 {dimension_numbers = #tpu.dot_dimension_numbers<[2], [1], [1], [2], [0, 0, 0, 1, 1, 2], [0], [0]>} : vector<2x8x8xbf16>, vector<2x8x32xbf16>, vector<2x8x32xf32> -> vector<2x8x32xf32>
    %25 = vector.shape_cast %22 : vector<2x8x32xf32> to vector<16x32xf32>
    %26 = arith.truncf %25 : vector<16x32xf32> to vector<16x32xbf16>
    %27 = vector.shape_cast %24 : vector<2x8x32xf32> to vector<16x32xf32>
    %28 = arith.truncf %27 : vector<16x32xf32> to vector<16x32xbf16>
    %29 = arith.truncf %15 : vector<16x32xf32> to vector<16x32xbf16>
    %30 = tpu.concatenate %26, %28, %29 in 1 : vector<16x32xbf16>, vector<16x32xbf16>, vector<16x32xbf16> -> vector<16x96xbf16>
    %cst_22 = arith.constant dense<0.000000e+00> : vector<16x96xf32>
    %31 = tpu.matmul %30, %3, %cst_22 {dimension_numbers = #tpu.dot_dimension_numbers<[1], [0], [0], [1], [0, 0, 1, 1], [], []>} : vector<16x96xbf16>, vector<96x96xbf16>, vector<16x96xf32> -> vector<16x96xf32>
    %32 = arith.addf %31, %10 : vector<16x96xf32>
    %33 = arith.truncf %15 : vector<16x32xf32> to vector<16x32xbf16>
    %cst_23 = arith.constant dense<0.000000e+00> : vector<16x32xf32>
    %34 = tpu.matmul %33, %4, %cst_23 {dimension_numbers = #tpu.dot_dimension_numbers<[1], [0], [0], [1], [0, 0, 1, 1], [], []>} : vector<16x32xbf16>, vector<32x32xbf16>, vector<16x32xf32> -> vector<16x32xf32>
    %35 = arith.addf %34, %13 : vector<16x32xf32>
    %36 = vector.extract_strided_slice %32 {offsets = [0, 0], sizes = [16, 32], strides = [1, 1]} : vector<16x96xf32> to vector<16x32xf32>
    %37 = arith.negf %36 : vector<16x32xf32>
    %38 = math.exp %37 : vector<16x32xf32>
    %cst_24 = arith.constant 1.000000e+00 : f32
    %39 = vector.broadcast %cst_24 : f32 to vector<16x32xf32>
    %40 = arith.addf %39, %38 : vector<16x32xf32>
    %41 = arith.divf %39, %40 : vector<16x32xf32>
    %42 = vector.extract_strided_slice %32 {offsets = [0, 32], sizes = [16, 32], strides = [1, 1]} : vector<16x96xf32> to vector<16x32xf32>
    %43 = arith.negf %42 : vector<16x32xf32>
    %44 = math.exp %43 : vector<16x32xf32>
    %cst_25 = arith.constant 1.000000e+00 : f32
    %45 = vector.broadcast %cst_25 : f32 to vector<16x32xf32>
    %46 = arith.addf %45, %44 : vector<16x32xf32>
    %47 = arith.divf %45, %46 : vector<16x32xf32>
    %48 = vector.extract_strided_slice %32 {offsets = [0, 64], sizes = [16, 32], strides = [1, 1]} : vector<16x96xf32> to vector<16x32xf32>
    %49 = arith.mulf %41, %35 : vector<16x32xf32>
    %50 = arith.addf %48, %49 : vector<16x32xf32>
    %51 = math.tanh %50 : vector<16x32xf32>
    %52 = arith.subf %15, %51 : vector<16x32xf32>
    %53 = arith.mulf %47, %52 : vector<16x32xf32>
    %54 = arith.addf %51, %53 : vector<16x32xf32>
    %55 = arith.truncf %54 : vector<16x32xf32> to vector<16x32xbf16>
    %cst_26 = arith.constant dense<0.000000e+00> : vector<16x64xf32>
    %56 = tpu.matmul %55, %2, %cst_26 {dimension_numbers = #tpu.dot_dimension_numbers<[1], [0], [0], [1], [0, 0, 1, 1], [], []>} : vector<16x32xbf16>, vector<32x64xbf16>, vector<16x64xf32> -> vector<16x64xf32>
    %57 = arith.addf %56, %7 : vector<16x64xf32>
    %58 = vector.shape_cast %57 : vector<16x64xf32> to vector<2x8x64xf32>
    %59 = arith.truncf %58 : vector<2x8x64xf32> to vector<2x8x64xbf16>
    %60 = vector.extract_strided_slice %59 {offsets = [0, 0, 0], sizes = [2, 8, 32], strides = [1, 1, 1]} : vector<2x8x64xbf16> to vector<2x8x32xbf16>
    %cst_27 = arith.constant dense<0.000000e+00> : vector<2x8x32xf32>
    %61 = tpu.matmul %0, %60, %cst_27 {dimension_numbers = #tpu.dot_dimension_numbers<[2], [1], [1], [2], [0, 0, 0, 1, 1, 2], [0], [0]>} : vector<2x8x8xbf16>, vector<2x8x32xbf16>, vector<2x8x32xf32> -> vector<2x8x32xf32>
    %62 = vector.extract_strided_slice %59 {offsets = [0, 0, 32], sizes = [2, 8, 32], strides = [1, 1, 1]} : vector<2x8x64xbf16> to vector<2x8x32xbf16>
    %cst_28 = arith.constant dense<0.000000e+00> : vector<2x8x32xf32>
    %63 = tpu.matmul %1, %62, %cst_28 {dimension_numbers = #tpu.dot_dimension_numbers<[2], [1], [1], [2], [0, 0, 0, 1, 1, 2], [0], [0]>} : vector<2x8x8xbf16>, vector<2x8x32xbf16>, vector<2x8x32xf32> -> vector<2x8x32xf32>
    %64 = vector.shape_cast %61 : vector<2x8x32xf32> to vector<16x32xf32>
    %65 = arith.truncf %64 : vector<16x32xf32> to vector<16x32xbf16>
    %66 = vector.shape_cast %63 : vector<2x8x32xf32> to vector<16x32xf32>
    %67 = arith.truncf %66 : vector<16x32xf32> to vector<16x32xbf16>
    %68 = arith.truncf %54 : vector<16x32xf32> to vector<16x32xbf16>
    %69 = tpu.concatenate %65, %67, %68 in 1 : vector<16x32xbf16>, vector<16x32xbf16>, vector<16x32xbf16> -> vector<16x96xbf16>
    %cst_29 = arith.constant dense<0.000000e+00> : vector<16x96xf32>
    %70 = tpu.matmul %69, %3, %cst_29 {dimension_numbers = #tpu.dot_dimension_numbers<[1], [0], [0], [1], [0, 0, 1, 1], [], []>} : vector<16x96xbf16>, vector<96x96xbf16>, vector<16x96xf32> -> vector<16x96xf32>
    %71 = arith.addf %70, %10 : vector<16x96xf32>
    %72 = arith.truncf %54 : vector<16x32xf32> to vector<16x32xbf16>
    %cst_30 = arith.constant dense<0.000000e+00> : vector<16x32xf32>
    %73 = tpu.matmul %72, %4, %cst_30 {dimension_numbers = #tpu.dot_dimension_numbers<[1], [0], [0], [1], [0, 0, 1, 1], [], []>} : vector<16x32xbf16>, vector<32x32xbf16>, vector<16x32xf32> -> vector<16x32xf32>
    %74 = arith.addf %73, %13 : vector<16x32xf32>
    %75 = vector.extract_strided_slice %71 {offsets = [0, 0], sizes = [16, 32], strides = [1, 1]} : vector<16x96xf32> to vector<16x32xf32>
    %76 = arith.negf %75 : vector<16x32xf32>
    %77 = math.exp %76 : vector<16x32xf32>
    %cst_31 = arith.constant 1.000000e+00 : f32
    %78 = vector.broadcast %cst_31 : f32 to vector<16x32xf32>
    %79 = arith.addf %78, %77 : vector<16x32xf32>
    %80 = arith.divf %78, %79 : vector<16x32xf32>
    %81 = vector.extract_strided_slice %71 {offsets = [0, 32], sizes = [16, 32], strides = [1, 1]} : vector<16x96xf32> to vector<16x32xf32>
    %82 = arith.negf %81 : vector<16x32xf32>
    %83 = math.exp %82 : vector<16x32xf32>
    %cst_32 = arith.constant 1.000000e+00 : f32
    %84 = vector.broadcast %cst_32 : f32 to vector<16x32xf32>
    %85 = arith.addf %84, %83 : vector<16x32xf32>
    %86 = arith.divf %84, %85 : vector<16x32xf32>
    %87 = vector.extract_strided_slice %71 {offsets = [0, 64], sizes = [16, 32], strides = [1, 1]} : vector<16x96xf32> to vector<16x32xf32>
    %88 = arith.mulf %80, %74 : vector<16x32xf32>
    %89 = arith.addf %87, %88 : vector<16x32xf32>
    %90 = math.tanh %89 : vector<16x32xf32>
    %91 = arith.subf %54, %90 : vector<16x32xf32>
    %92 = arith.mulf %86, %91 : vector<16x32xf32>
    %93 = arith.addf %90, %92 : vector<16x32xf32>
    %94 = vector.shape_cast %93 : vector<16x32xf32> to vector<2x8x32xf32>
    %c0_33 = arith.constant 0 : index
    %c0_34 = arith.constant 0 : index
    %c0_35 = arith.constant 0 : index
    %95 = vector.load %arg10[%c0_33, %c0_34, %c0_35] : memref<2x8x32xf32, #tpu.memory_space<vmem>>, vector<2x8x32xf32>
    tpu.vector_store %arg10[%c0_33, %c0_34, %c0_35], %94 {strides = array<i32>} : memref<2x8x32xf32, #tpu.memory_space<vmem>>, vector<2x8x32xf32>,
    return
  }
  func.func @transform_0(%arg0: i32) -> (i32, i32, i32) {
    %c0_i32 = arith.constant 0 : i32
    %c0_i32_0 = arith.constant 0 : i32
    %c0_i32_1 = arith.constant 0 : i32
    return %arg0, %c0_i32, %c0_i32_0 : i32, i32, i32
  }
  func.func @transform_1(%arg0: i32) -> (i32, i32, i32) {
    %c0_i32 = arith.constant 0 : i32
    %c0_i32_0 = arith.constant 0 : i32
    %c0_i32_1 = arith.constant 0 : i32
    return %arg0, %c0_i32, %c0_i32_0 : i32, i32, i32
  }
  func.func @transform_2(%arg0: i32) -> (i32, i32, i32) {
    %c0_i32 = arith.constant 0 : i32
    %c0_i32_0 = arith.constant 0 : i32
    %c0_i32_1 = arith.constant 0 : i32
    return %arg0, %c0_i32, %c0_i32_0 : i32, i32, i32
  }
  func.func @transform_3(%arg0: i32) -> (i32, i32) {
    %c0_i32 = arith.constant 0 : i32
    %c0_i32_0 = arith.constant 0 : i32
    %c0_i32_1 = arith.constant 0 : i32
    return %c0_i32, %c0_i32_0 : i32, i32
  }
  func.func @transform_4(%arg0: i32) -> (i32, i32) {
    %c0_i32 = arith.constant 0 : i32
    %c0_i32_0 = arith.constant 0 : i32
    %c0_i32_1 = arith.constant 0 : i32
    return %c0_i32, %c0_i32_0 : i32, i32
  }
  func.func @transform_5(%arg0: i32) -> (i32, i32) {
    %c0_i32 = arith.constant 0 : i32
    %c0_i32_0 = arith.constant 0 : i32
    %c0_i32_1 = arith.constant 0 : i32
    return %c0_i32, %c0_i32_0 : i32, i32
  }
  func.func @transform_6(%arg0: i32) -> (i32, i32) {
    %c0_i32 = arith.constant 0 : i32
    %c0_i32_0 = arith.constant 0 : i32
    %c0_i32_1 = arith.constant 0 : i32
    return %c0_i32, %c0_i32_0 : i32, i32
  }
  func.func @transform_7(%arg0: i32) -> (i32, i32) {
    %c0_i32 = arith.constant 0 : i32
    %c0_i32_0 = arith.constant 0 : i32
    %c0_i32_1 = arith.constant 0 : i32
    return %c0_i32, %c0_i32_0 : i32, i32
  }
  func.func @transform_8(%arg0: i32) -> (i32, i32) {
    %c0_i32 = arith.constant 0 : i32
    %c0_i32_0 = arith.constant 0 : i32
    %c0_i32_1 = arith.constant 0 : i32
    return %c0_i32, %c0_i32_0 : i32, i32
  }
  func.func @transform_9(%arg0: i32) -> (i32, i32, i32) {
    %c0_i32 = arith.constant 0 : i32
    %c0_i32_0 = arith.constant 0 : i32
    %c0_i32_1 = arith.constant 0 : i32
    return %arg0, %c0_i32, %c0_i32_0 : i32, i32, i32
  }
}

</mosaic_0001>

<llo_original>
// kernel: g2sr_forward.1
$region0: #{g2sr_forward.1}
  #allocation0 [shape = 'u32[]', space=smem, size = 0x4, offset = 0x4, fixed_abs, tag = 'smem constant byte address 0x4 - core index']
  #allocation1 [shape = 'u32[144,128]{1,0:T(1,128)}', space=vmem, size = 0x12000, scoped, tag = 'internal scratch']
  %s0 = inlined_call_operand.vmem [shape: bf16[2,8,8], index: 0, kind: input, shape index: {}]
  %s1 = inlined_call_operand.vmem [shape: bf16[2,8,8], index: 1, kind: input, shape index: {}]
  %s2 = inlined_call_operand.vmem [shape: f32[2,8,32], index: 2, kind: input, shape index: {}]
  %s3 = inlined_call_operand.vmem [shape: bf16[32,64], index: 3, kind: input, shape index: {}]
  %s4 = inlined_call_operand.vmem [shape: bf16[96,96], index: 4, kind: input, shape index: {}]
  %s5 = inlined_call_operand.vmem [shape: bf16[32,32], index: 5, kind: input, shape index: {}]
  %s6 = inlined_call_operand.vmem [shape: f32[1,64], index: 6, kind: input, shape index: {}]
  %s7 = inlined_call_operand.vmem [shape: f32[1,96], index: 7, kind: input, shape index: {}]
  %s8 = inlined_call_operand.vmem [shape: f32[1,32], index: 8, kind: input, shape index: {}]
  %s9 = inlined_call_operand.hbm [shape: f32[2,8,32], index: 9, kind: output, shape index: {}]
  %s10 = sld [smem:[#allocation0]]
  $region46: #{g2sr_forward.1} parent=0
    _
  %s12 = ssub.s32 1, %s10
  %s13 = scalar_select 0, %s12, %s10
  $region1: #{g2sr_forward.1} parent=0
    #allocation2 [shape = 'u8[8192]{0}', space=vmem, size = 0x2000, scoped, tag = 'output window, operand 0, single buffered']
    #allocation3 [shape = 's32[1]{0}', space=sflag, size = 0x4, scoped, tag = 'scoped memory for g2sr_forward.1']
    %14 = vsyncpa [#allocation3], 0
    // Predicated region
    $region2: #{g2sr_forward.1} parent=1 // pred_check
      _
    $region3: #{g2sr_forward.1} parent=1 // pred_check_branch
      %16 = sbr.rel (0) target = $region5
    $region4: #{g2sr_forward.1} parent=1 // pred_region
      _
    $region5: #{g2sr_forward.1} parent=1 // pred_fallthru
      _
    // Predicated region
    $region6: #{g2sr_forward.1} parent=1 // pred_check
      _
    $region7: #{g2sr_forward.1} parent=1 // pred_check_branch
      %18 = sbr.rel (0) target = $region9
    $region8: #{g2sr_forward.1} parent=1 // pred_region
      _
    $region9: #{g2sr_forward.1} parent=1 // pred_fallthru
      _
    // Predicated region
    $region10: #{g2sr_forward.1} parent=1 // pred_check
      _
    $region11: #{g2sr_forward.1} parent=1 // pred_check_branch
      %20 = sbr.rel (0) target = $region13
    $region12: #{g2sr_forward.1} parent=1 // pred_region
      _
    $region13: #{g2sr_forward.1} parent=1 // pred_fallthru
      _
    // Predicated region
    $region14: #{g2sr_forward.1} parent=1 // pred_check
      _
    $region15: #{g2sr_forward.1} parent=1 // pred_check_branch
      %22 = sbr.rel (0) target = $region17
    $region16: #{g2sr_forward.1} parent=1 // pred_region
      _
    $region17: #{g2sr_forward.1} parent=1 // pred_fallthru
      _
    // Predicated region
    $region18: #{g2sr_forward.1} parent=1 // pred_check
      _
    $region19: #{g2sr_forward.1} parent=1 // pred_check_branch
      %24 = sbr.rel (0) target = $region21
    $region20: #{g2sr_forward.1} parent=1 // pred_region
      _
    $region21: #{g2sr_forward.1} parent=1 // pred_fallthru
      _
    // Predicated region
    $region22: #{g2sr_forward.1} parent=1 // pred_check
      _
    $region23: #{g2sr_forward.1} parent=1 // pred_check_branch
      %26 = sbr.rel (0) target = $region25
    $region24: #{g2sr_forward.1} parent=1 // pred_region
      _
    $region25: #{g2sr_forward.1} parent=1 // pred_fallthru
      _
    // Predicated region
    $region26: #{g2sr_forward.1} parent=1 // pred_check
      _
    $region27: #{g2sr_forward.1} parent=1 // pred_check_branch
      %28 = sbr.rel (0) target = $region29
    $region28: #{g2sr_forward.1} parent=1 // pred_region
      _
    $region29: #{g2sr_forward.1} parent=1 // pred_fallthru
      _
    // Predicated region
    $region30: #{g2sr_forward.1} parent=1 // pred_check
      _
    $region31: #{g2sr_forward.1} parent=1 // pred_check_branch
      %30 = sbr.rel (0) target = $region33
    $region32: #{g2sr_forward.1} parent=1 // pred_region
      _
    $region33: #{g2sr_forward.1} parent=1 // pred_fallthru
      _
    // Predicated region
    $region34: #{g2sr_forward.1} parent=1 // pred_check
      _
    $region35: #{g2sr_forward.1} parent=1 // pred_check_branch
      %32 = sbr.rel (0) target = $region37
    $region36: #{g2sr_forward.1} parent=1 // pred_region
      _
    $region37: #{g2sr_forward.1} parent=1 // pred_fallthru
      _
    %v34 = vld [vmem:[%s0] sm:$0xf]
    %v35 = vld [vmem:[%s0 + $0x4] sm:$0xf]
    %v36 = vld [vmem:[%s1] sm:$0xf]
    %v37 = vld [vmem:[%s1 + $0x4] sm:$0xf]
    %v38 = vld [vmem:[%s3] sm:$0xf]
    %v39 = vld [vmem:[%s3 + $0x4] sm:$0xf]
    %v40 = vld [vmem:[%s3 + $0x8] sm:$0xf]
    %v41 = vld [vmem:[%s3 + $0xc] sm:$0xf]
    %v42 = vld [vmem:[%s4] sm:$0xf]
    %v43 = vld [vmem:[%s4 + $0x4] sm:$0xf]
    %v44 = vld [vmem:[%s4 + $0x8] sm:$0xf]
    %v45 = vld [vmem:[%s4 + $0xc] sm:$0xf]
    %v46 = vld [vmem:[%s4 + $0x10] sm:$0xf]
    %v47 = vld [vmem:[%s4 + $0x14] sm:$0xf]
    %v48 = vld [vmem:[%s4 + $0x18] sm:$0xf]
    %v49 = vld [vmem:[%s4 + $0x1c] sm:$0xf]
    %v50 = vld [vmem:[%s4 + $0x20] sm:$0xf]
    %v51 = vld [vmem:[%s4 + $0x24] sm:$0xf]
    %v52 = vld [vmem:[%s4 + $0x28] sm:$0xf]
    %v53 = vld [vmem:[%s4 + $0x2c] sm:$0xf]
    %v54 = vld [vmem:[%s5] sm:$0xf]
    %v55 = vld [vmem:[%s5 + $0x4] sm:$0xf]
    %v56 = vld [vmem:[%s5 + $0x8] sm:$0xf]
    %v57 = vld [vmem:[%s5 + $0xc] sm:$0xf]
    %v58 = vld [vmem:[%s6] sm:$0x1]
    %v60 = vlaneseq
    %v61 = vshrl.u32 %v60, 7
    %v62 = vsub.s32 0, %v61
    %v63 = vrot.slane %v58, %v62
    %v65 = vld [vmem:[%s7] sm:$0x1]
    %v67 = vlaneseq
    %v68 = vshrl.u32 %v67, 7
    %v69 = vsub.s32 0, %v68
    %v70 = vrot.slane %v65, %v69
    %v72 = vld [vmem:[%s8] sm:$0x1]
    %v74 = vlaneseq
    %v75 = vshrl.u32 %v74, 7
    %v76 = vsub.s32 0, %v75
    %v77 = vrot.slane %v72, %v76
    %v79 = vld [vmem:[%s2] sm:$0xff]
    %v80 = vld [vmem:[%s2 + $0x8] sm:$0xff]
    %v81 = vpack.c.bf16 %v80, %v79
    %v86 = vunpack.c.l.b16 %v38
    %v87 = vunpack.c.l.b16 %v39
    %v88 = vunpack.c.l.b16 %v40
    %v89 = vunpack.c.l.b16 %v41
    %v90 = vpack.c.b16 %v87, %v86
    %v91 = vpack.c.b16 %v89, %v88
    %vm94 = vcmask 261120
    %v96 = vsel %vm94, %v81, 0
    %98 = vmatprep.subr.bf16.mxu0 0
    %99 = vmatpush1.bf16.msra.mxu0 %v90
    %100 = vmatprep.subr.bf16.mxu0 0
    %101 = vmatpush1.bf16.msra.mxu0 %v91
    %102 = vmatprep.subr.bf16.mxu0 0
    %103 = vmatpush1.bf16.msra.mxu0 0
    %104 = vmatprep.subr.bf16.mxu0 0
    %105 = vmatpush1.bf16.msra.mxu0 0
    %106 = vmatprep.subr.bf16.mxu0 0
    %107 = vmatpush1.bf16.msra.mxu0 0
    %108 = vmatprep.subr.bf16.mxu0 0
    %109 = vmatpush1.bf16.msra.mxu0 0
    %110 = vmatprep.subr.bf16.mxu0 0
    %111 = vmatpush1.bf16.msra.mxu0 0
    %112 = vmatprep.subr.bf16.mxu0 0
    %113 = vmatpush1.bf16.msra.mxu0 0
    %114 = vmatprep.subr.bf16.mxu0 0
    %115 = vmatpush1.bf16.msra.mxu0 0
    %116 = vmatprep.subr.bf16.mxu0 0
    %117 = vmatpush1.bf16.msra.mxu0 0
    %118 = vmatprep.subr.bf16.mxu0 0
    %119 = vmatpush1.bf16.msra.mxu0 0
    %120 = vmatprep.subr.bf16.mxu0 0
    %121 = vmatpush1.bf16.msra.mxu0 0
    %122 = vmatprep.subr.bf16.mxu0 0
    %123 = vmatpush1.bf16.msra.mxu0 0
    %124 = vmatprep.subr.bf16.mxu0 0
    %125 = vmatpush1.bf16.msra.mxu0 0
    %126 = vmatprep.subr.bf16.mxu0 0
    %127 = vmatpush1.bf16.msra.mxu0 0
    %128 = vmatprep.subr.bf16.mxu0 0
    %129 = vmatpush1.bf16.msra.mxu0 0
    %130 = vmatprep.mubr.bf16.mxu0 0
    %131 = vmatmul.mubr.bf16.gmra.mrb[0].mxu0 %v96
    %v132 = vpop.f32.mrb[0].mxu0
    %v133 = vadd.f32 %v63, %v132
    %v134 = vpop.f32.mrb[0].mxu0
    %v135 = vpop.f32.mrb[0].mxu0
    %v136 = vadd.f32 %v63, %v135
    %v137 = vpop.f32.mrb[0].mxu0
    %138 = vdwg.mxu0
    %v139 = vpack.c.bf16 %v133, %v133
    %v140 = vpack.c.bf16 %v136, %v136
    %vm141 = vcmask 64512
    %v143 = vsel %vm141, %v34, 0
    %vm145 = vcmask 1043456
    %v147 = vsel %vm145, %v139, 0
    %149 = vmatprep.subr.bf16.mxu0 0
    %150 = vmatpush1.bf16.msra.mxu0 %v147
    %151 = vmatprep.subr.bf16.mxu0 0
    %152 = vmatpush1.bf16.msra.mxu0 0
    %153 = vmatprep.subr.bf16.mxu0 0
    %154 = vmatpush1.bf16.msra.mxu0 0
    %155 = vmatprep.subr.bf16.mxu0 0
    %156 = vmatpush1.bf16.msra.mxu0 0
    %157 = vmatprep.subr.bf16.mxu0 0
    %158 = vmatpush1.bf16.msra.mxu0 0
    %159 = vmatprep.subr.bf16.mxu0 0
    %160 = vmatpush1.bf16.msra.mxu0 0
    %161 = vmatprep.subr.bf16.mxu0 0
    %162 = vmatpush1.bf16.msra.mxu0 0
    %163 = vmatprep.subr.bf16.mxu0 0
    %164 = vmatpush1.bf16.msra.mxu0 0
    %165 = vmatprep.subr.bf16.mxu0 0
    %166 = vmatpush1.bf16.msra.mxu0 0
    %167 = vmatprep.subr.bf16.mxu0 0
    %168 = vmatpush1.bf16.msra.mxu0 0
    %169 = vmatprep.subr.bf16.mxu0 0
    %170 = vmatpush1.bf16.msra.mxu0 0
    %171 = vmatprep.subr.bf16.mxu0 0
    %172 = vmatpush1.bf16.msra.mxu0 0
    %173 = vmatprep.subr.bf16.mxu0 0
    %174 = vmatpush1.bf16.msra.mxu0 0
    %175 = vmatprep.subr.bf16.mxu0 0
    %176 = vmatpush1.bf16.msra.mxu0 0
    %177 = vmatprep.subr.bf16.mxu0 0
    %178 = vmatpush1.bf16.msra.mxu0 0
    %179 = vmatprep.subr.bf16.mxu0 0
    %180 = vmatpush1.bf16.msra.mxu0 0
    %181 = vmatprep.mubr.bf16.mxu0 0
    %182 = vmatmul.mubr.bf16.gmra.mrb[0].mxu0 %v143
    %v183 = vpop.f32.mrb[0].mxu0
    %v184 = vadd.f32 0.0, %v183
    %v185 = vpop.f32.mrb[0].mxu0
    %v186 = vpop.f32.mrb[0].mxu0
    %v187 = vpop.f32.mrb[0].mxu0
    %188 = vdwg.mxu0
    %v190 = vsel %vm141, %v35, 0
    %v193 = vsel %vm145, %v140, 0
    %195 = vmatprep.subr.bf16.mxu0 0
    %196 = vmatpush1.bf16.msra.mxu0 %v193
    %197 = vmatprep.subr.bf16.mxu0 0
    %198 = vmatpush1.bf16.msra.mxu0 0
    %199 = vmatprep.subr.bf16.mxu0 0
    %200 = vmatpush1.bf16.msra.mxu0 0
    %201 = vmatprep.subr.bf16.mxu0 0
    %202 = vmatpush1.bf16.msra.mxu0 0
    %203 = vmatprep.subr.bf16.mxu0 0
    %204 = vmatpush1.bf16.msra.mxu0 0
    %205 = vmatprep.subr.bf16.mxu0 0
    %206 = vmatpush1.bf16.msra.mxu0 0
    %207 = vmatprep.subr.bf16.mxu0 0
    %208 = vmatpush1.bf16.msra.mxu0 0
    %209 = vmatprep.subr.bf16.mxu0 0
    %210 = vmatpush1.bf16.msra.mxu0 0
    %211 = vmatprep.subr.bf16.mxu0 0
    %212 = vmatpush1.bf16.msra.mxu0 0
    %213 = vmatprep.subr.bf16.mxu0 0
    %214 = vmatpush1.bf16.msra.mxu0 0
    %215 = vmatprep.subr.bf16.mxu0 0
    %216 = vmatpush1.bf16.msra.mxu0 0
    %217 = vmatprep.subr.bf16.mxu0 0
    %218 = vmatpush1.bf16.msra.mxu0 0
    %219 = vmatprep.subr.bf16.mxu0 0
    %220 = vmatpush1.bf16.msra.mxu0 0
    %221 = vmatprep.subr.bf16.mxu0 0
    %222 = vmatpush1.bf16.msra.mxu0 0
    %223 = vmatprep.subr.bf16.mxu0 0
    %224 = vmatpush1.bf16.msra.mxu0 0
    %225 = vmatprep.subr.bf16.mxu0 0
    %226 = vmatpush1.bf16.msra.mxu0 0
    %227 = vmatprep.mubr.bf16.mxu0 0
    %228 = vmatmul.mubr.bf16.gmra.mrb[0].mxu0 %v190
    %v229 = vpop.f32.mrb[0].mxu0
    %v230 = vadd.f32 0.0, %v229
    %v231 = vpop.f32.mrb[0].mxu0
    %v232 = vpop.f32.mrb[0].mxu0
    %v233 = vpop.f32.mrb[0].mxu0
    %234 = vdwg.mxu0
    %236 = vrot.lane.b32.xlu0 %v139, 96
    %v237 = vpop.permute.xlu0 %236
    %v239 = vsel %vm141, %v36, 0
    %v242 = vsel %vm145, %v237, 0
    %244 = vmatprep.subr.bf16.mxu0 0
    %245 = vmatpush1.bf16.msra.mxu0 %v242
    %246 = vmatprep.subr.bf16.mxu0 0
    %247 = vmatpush1.bf16.msra.mxu0 0
    %248 = vmatprep.subr.bf16.mxu0 0
    %249 = vmatpush1.bf16.msra.mxu0 0
    %250 = vmatprep.subr.bf16.mxu0 0
    %251 = vmatpush1.bf16.msra.mxu0 0
    %252 = vmatprep.subr.bf16.mxu0 0
    %253 = vmatpush1.bf16.msra.mxu0 0
    %254 = vmatprep.subr.bf16.mxu0 0
    %255 = vmatpush1.bf16.msra.mxu0 0
    %256 = vmatprep.subr.bf16.mxu0 0
    %257 = vmatpush1.bf16.msra.mxu0 0
    %258 = vmatprep.subr.bf16.mxu0 0
    %259 = vmatpush1.bf16.msra.mxu0 0
    %260 = vmatprep.subr.bf16.mxu0 0
    %261 = vmatpush1.bf16.msra.mxu0 0
    %262 = vmatprep.subr.bf16.mxu0 0
    %263 = vmatpush1.bf16.msra.mxu0 0
    %264 = vmatprep.subr.bf16.mxu0 0
    %265 = vmatpush1.bf16.msra.mxu0 0
    %266 = vmatprep.subr.bf16.mxu0 0
    %267 = vmatpush1.bf16.msra.mxu0 0
    %268 = vmatprep.subr.bf16.mxu0 0
    %269 = vmatpush1.bf16.msra.mxu0 0
    %270 = vmatprep.subr.bf16.mxu0 0
    %271 = vmatpush1.bf16.msra.mxu0 0
    %272 = vmatprep.subr.bf16.mxu0 0
    %273 = vmatpush1.bf16.msra.mxu0 0
    %274 = vmatprep.subr.bf16.mxu0 0
    %275 = vmatpush1.bf16.msra.mxu0 0
    %276 = vmatprep.mubr.bf16.mxu0 0
    %277 = vmatmul.mubr.bf16.gmra.mrb[0].mxu0 %v239
    %v278 = vpop.f32.mrb[0].mxu0
    %v279 = vadd.f32 0.0, %v278
    %v280 = vpop.f32.mrb[0].mxu0
    %v281 = vpop.f32.mrb[0].mxu0
    %v282 = vpop.f32.mrb[0].mxu0
    %283 = vdwg.mxu0
    %285 = vrot.lane.b32.xlu0 %v140, 96
    %v286 = vpop.permute.xlu0 %285
    %v288 = vsel %vm141, %v37, 0
    %v291 = vsel %vm145, %v286, 0
    %293 = vmatprep.subr.bf16.mxu0 0
    %294 = vmatpush1.bf16.msra.mxu0 %v291
    %295 = vmatprep.subr.bf16.mxu0 0
    %296 = vmatpush1.bf16.msra.mxu0 0
    %297 = vmatprep.subr.bf16.mxu0 0
    %298 = vmatpush1.bf16.msra.mxu0 0
    %299 = vmatprep.subr.bf16.mxu0 0
    %300 = vmatpush1.bf16.msra.mxu0 0
    %301 = vmatprep.subr.bf16.mxu0 0
    %302 = vmatpush1.bf16.msra.mxu0 0
    %303 = vmatprep.subr.bf16.mxu0 0
    %304 = vmatpush1.bf16.msra.mxu0 0
    %305 = vmatprep.subr.bf16.mxu0 0
    %306 = vmatpush1.bf16.msra.mxu0 0
    %307 = vmatprep.subr.bf16.mxu0 0
    %308 = vmatpush1.bf16.msra.mxu0 0
    %309 = vmatprep.subr.bf16.mxu0 0
    %310 = vmatpush1.bf16.msra.mxu0 0
    %311 = vmatprep.subr.bf16.mxu0 0
    %312 = vmatpush1.bf16.msra.mxu0 0
    %313 = vmatprep.subr.bf16.mxu0 0
    %314 = vmatpush1.bf16.msra.mxu0 0
    %315 = vmatprep.subr.bf16.mxu0 0
    %316 = vmatpush1.bf16.msra.mxu0 0
    %317 = vmatprep.subr.bf16.mxu0 0
    %318 = vmatpush1.bf16.msra.mxu0 0
    %319 = vmatprep.subr.bf16.mxu0 0
    %320 = vmatpush1.bf16.msra.mxu0 0
    %321 = vmatprep.subr.bf16.mxu0 0
    %322 = vmatpush1.bf16.msra.mxu0 0
    %323 = vmatprep.subr.bf16.mxu0 0
    %324 = vmatpush1.bf16.msra.mxu0 0
    %325 = vmatprep.mubr.bf16.mxu0 0
    %326 = vmatmul.mubr.bf16.gmra.mrb[0].mxu0 %v288
    %v327 = vpop.f32.mrb[0].mxu0
    %v328 = vadd.f32 0.0, %v327
    %v329 = vpop.f32.mrb[0].mxu0
    %v330 = vpop.f32.mrb[0].mxu0
    %v331 = vpop.f32.mrb[0].mxu0
    %332 = vdwg.mxu0
    %v333 = vpack.c.bf16 %v230, %v184
    %v334 = vpack.c.bf16 %v328, %v279
    %336 = vrot.lane.b32.xlu0 %v334, 32
    %v337 = vpop.permute.xlu0 %336
    %339 = vrot.lane.b32.xlu0 %v81, 64
    %v340 = vpop.permute.xlu0 %339
    %v343 = vsel %vm94, %v333, %v337
    %vm344 = vcmask 523264
    %v346 = vsel %vm344, %v343, %v340
    %v359 = vunpack.c.l.b16 %v42
    %v360 = vunpack.c.l.b16 %v43
    %v361 = vunpack.c.l.b16 %v44
    %v362 = vunpack.c.l.b16 %v45
    %v363 = vunpack.c.l.b16 %v46
    %v364 = vunpack.c.l.b16 %v47
    %v365 = vunpack.c.l.b16 %v48
    %v366 = vunpack.c.l.b16 %v49
    %v367 = vunpack.c.l.b16 %v50
    %v368 = vunpack.c.l.b16 %v51
    %v369 = vunpack.c.l.b16 %v52
    %v370 = vunpack.c.l.b16 %v53
    %v371 = vpack.c.b16 %v360, %v359
    %v372 = vpack.c.b16 %v362, %v361
    %v373 = vpack.c.b16 %v364, %v363
    %v374 = vpack.c.b16 %v366, %v365
    %v375 = vpack.c.b16 %v368, %v367
    %v376 = vpack.c.b16 %v370, %v369
    %vm383 = vcmask 785408
    %v384 = vsel %vm383, %v346, 0
    %386 = vmatprep.subr.bf16.mxu0 0
    %387 = vmatpush1.bf16.msra.mxu0 %v371
    %388 = vmatprep.subr.bf16.mxu0 0
    %389 = vmatpush1.bf16.msra.mxu0 %v372
    %390 = vmatprep.subr.bf16.mxu0 0
    %391 = vmatpush1.bf16.msra.mxu0 %v373
    %392 = vmatprep.subr.bf16.mxu0 0
    %393 = vmatpush1.bf16.msra.mxu0 %v374
    %394 = vmatprep.subr.bf16.mxu0 0
    %395 = vmatpush1.bf16.msra.mxu0 %v375
    %396 = vmatprep.subr.bf16.mxu0 0
    %397 = vmatpush1.bf16.msra.mxu0 %v376
    %398 = vmatprep.subr.bf16.mxu0 0
    %399 = vmatpush1.bf16.msra.mxu0 0
    %400 = vmatprep.subr.bf16.mxu0 0
    %401 = vmatpush1.bf16.msra.mxu0 0
    %402 = vmatprep.subr.bf16.mxu0 0
    %403 = vmatpush1.bf16.msra.mxu0 0
    %404 = vmatprep.subr.bf16.mxu0 0
    %405 = vmatpush1.bf16.msra.mxu0 0
    %406 = vmatprep.subr.bf16.mxu0 0
    %407 = vmatpush1.bf16.msra.mxu0 0
    %408 = vmatprep.subr.bf16.mxu0 0
    %409 = vmatpush1.bf16.msra.mxu0 0
    %410 = vmatprep.subr.bf16.mxu0 0
    %411 = vmatpush1.bf16.msra.mxu0 0
    %412 = vmatprep.subr.bf16.mxu0 0
    %413 = vmatpush1.bf16.msra.mxu0 0
    %414 = vmatprep.subr.bf16.mxu0 0
    %415 = vmatpush1.bf16.msra.mxu0 0
    %416 = vmatprep.subr.bf16.mxu0 0
    %417 = vmatpush1.bf16.msra.mxu0 0
    %418 = vmatprep.mubr.bf16.mxu0 0
    %419 = vmatmul.mubr.bf16.gmra.mrb[0].mxu0 %v384
    %v420 = vpop.f32.mrb[0].mxu0
    %v421 = vadd.f32 %v70, %v420
    %v422 = vpop.f32.mrb[0].mxu0
    %v423 = vpop.f32.mrb[0].mxu0
    %v424 = vadd.f32 %v70, %v423
    %v425 = vpop.f32.mrb[0].mxu0
    %426 = vdwg.mxu0
    %v431 = vunpack.c.l.b16 %v54
    %v432 = vunpack.c.l.b16 %v55
    %v433 = vunpack.c.l.b16 %v56
    %v434 = vunpack.c.l.b16 %v57
    %v435 = vpack.c.b16 %v432, %v431
    %v436 = vpack.c.b16 %v434, %v433
    %439 = vmatprep.subr.bf16.mxu0 0
    %440 = vmatpush1.bf16.msra.mxu0 %v435
    %441 = vmatprep.subr.bf16.mxu0 0
    %442 = vmatpush1.bf16.msra.mxu0 %v436
    %443 = vmatprep.subr.bf16.mxu0 0
    %444 = vmatpush1.bf16.msra.mxu0 0
    %445 = vmatprep.subr.bf16.mxu0 0
    %446 = vmatpush1.bf16.msra.mxu0 0
    %447 = vmatprep.subr.bf16.mxu0 0
    %448 = vmatpush1.bf16.msra.mxu0 0
    %449 = vmatprep.subr.bf16.mxu0 0
    %450 = vmatpush1.bf16.msra.mxu0 0
    %451 = vmatprep.subr.bf16.mxu0 0
    %452 = vmatpush1.bf16.msra.mxu0 0
    %453 = vmatprep.subr.bf16.mxu0 0
    %454 = vmatpush1.bf16.msra.mxu0 0
    %455 = vmatprep.subr.bf16.mxu0 0
    %456 = vmatpush1.bf16.msra.mxu0 0
    %457 = vmatprep.subr.bf16.mxu0 0
    %458 = vmatpush1.bf16.msra.mxu0 0
    %459 = vmatprep.subr.bf16.mxu0 0
    %460 = vmatpush1.bf16.msra.mxu0 0
    %461 = vmatprep.subr.bf16.mxu0 0
    %462 = vmatpush1.bf16.msra.mxu0 0
    %463 = vmatprep.subr.bf16.mxu0 0
    %464 = vmatpush1.bf16.msra.mxu0 0
    %465 = vmatprep.subr.bf16.mxu0 0
    %466 = vmatpush1.bf16.msra.mxu0 0
    %467 = vmatprep.subr.bf16.mxu0 0
    %468 = vmatpush1.bf16.msra.mxu0 0
    %469 = vmatprep.subr.bf16.mxu0 0
    %470 = vmatpush1.bf16.msra.mxu0 0
    %471 = vmatprep.mubr.bf16.mxu0 0
    %472 = vmatmul.mubr.bf16.gmra.mrb[0].mxu0 %v96
    %v473 = vpop.f32.mrb[0].mxu0
    %v474 = vadd.f32 %v77, %v473
    %v475 = vpop.f32.mrb[0].mxu0
    %v476 = vpop.f32.mrb[0].mxu0
    %v477 = vadd.f32 %v77, %v476
    %v478 = vpop.f32.mrb[0].mxu0
    %479 = vdwg.mxu0
    %v480 = vxor.u32 %v421, 2147483648
    %v481 = vxor.u32 %v424, 2147483648
    %v482 = vmul.f32 %v480, 1.442695
    %v483 = vpow.pop %v482
    %v484 = vmul.f32 %v481, 1.442695
    %v485 = vpow.pop %v484
    %v486 = vadd.f32 %v483, 1.0
    %v487 = vadd.f32 %v485, 1.0
    %v488 = vrcp.pop %v486
    %v489 = vmul.f32 1.0, %v488
    %v490 = vrcp.pop %v487
    %v491 = vmul.f32 1.0, %v490
    %v492 = vmul.f32 %v489, %v474
    %v493 = vmul.f32 %v491, %v477
    %496 = vrot.lane.b32.xlu0 %v492, 64
    %v497 = vpop.permute.xlu0 %496
    %498 = vrot.lane.b32.xlu0 %v493, 64
    %v499 = vpop.permute.xlu0 %498
    %v502 = vadd.f32 %v421, %v497
    %v503 = vadd.f32 %v424, %v499
    %v504 = vtanh.pop %v502
    %v505 = vtanh.pop %v503
    %508 = vrot.lane.b32.xlu0 %v504, 64
    %v509 = vpop.permute.xlu0 %508
    %510 = vrot.lane.b32.xlu0 %v505, 64
    %v511 = vpop.permute.xlu0 %510
    %v514 = vsub.f32 %v79, %v509
    %v515 = vsub.f32 %v80, %v511
    %518 = vrot.lane.b32.xlu0 %v514, 32
    %v519 = vpop.permute.xlu0 %518
    %520 = vrot.lane.b32.xlu0 %v515, 32
    %v521 = vpop.permute.xlu0 %520
    %v524 = vmul.f32 %v489, %v519
    %v525 = vmul.f32 %v491, %v521
    %528 = vrot.lane.b32.xlu0 %v524, 32
    %v529 = vpop.permute.xlu0 %528
    %530 = vrot.lane.b32.xlu0 %v525, 32
    %v531 = vpop.permute.xlu0 %530
    %v534 = vadd.f32 %v504, %v529
    %v535 = vadd.f32 %v505, %v531
    %v536 = vpack.c.bf16 %v535, %v534
    %538 = vrot.lane.b32.xlu0 %v536, 64
    %v539 = vpop.permute.xlu0 %538
    %v541 = vsel %vm94, %v539, 0
    %543 = vmatprep.subr.bf16.mxu0 0
    %544 = vmatpush1.bf16.msra.mxu0 %v90
    %545 = vmatprep.subr.bf16.mxu0 0
    %546 = vmatpush1.bf16.msra.mxu0 %v91
    %547 = vmatprep.subr.bf16.mxu0 0
    %548 = vmatpush1.bf16.msra.mxu0 0
    %549 = vmatprep.subr.bf16.mxu0 0
    %550 = vmatpush1.bf16.msra.mxu0 0
    %551 = vmatprep.subr.bf16.mxu0 0
    %552 = vmatpush1.bf16.msra.mxu0 0
    %553 = vmatprep.subr.bf16.mxu0 0
    %554 = vmatpush1.bf16.msra.mxu0 0
    %555 = vmatprep.subr.bf16.mxu0 0
    %556 = vmatpush1.bf16.msra.mxu0 0
    %557 = vmatprep.subr.bf16.mxu0 0
    %558 = vmatpush1.bf16.msra.mxu0 0
    %559 = vmatprep.subr.bf16.mxu0 0
    %560 = vmatpush1.bf16.msra.mxu0 0
    %561 = vmatprep.subr.bf16.mxu0 0
    %562 = vmatpush1.bf16.msra.mxu0 0
    %563 = vmatprep.subr.bf16.mxu0 0
    %564 = vmatpush1.bf16.msra.mxu0 0
    %565 = vmatprep.subr.bf16.mxu0 0
    %566 = vmatpush1.bf16.msra.mxu0 0
    %567 = vmatprep.subr.bf16.mxu0 0
    %568 = vmatpush1.bf16.msra.mxu0 0
    %569 = vmatprep.subr.bf16.mxu0 0
    %570 = vmatpush1.bf16.msra.mxu0 0
    %571 = vmatprep.subr.bf16.mxu0 0
    %572 = vmatpush1.bf16.msra.mxu0 0
    %573 = vmatprep.subr.bf16.mxu0 0
    %574 = vmatpush1.bf16.msra.mxu0 0
    %575 = vmatprep.mubr.bf16.mxu0 0
    %576 = vmatmul.mubr.bf16.gmra.mrb[0].mxu0 %v541
    %v577 = vpop.f32.mrb[0].mxu0
    %v578 = vadd.f32 %v63, %v577
    %v579 = vpop.f32.mrb[0].mxu0
    %v580 = vpop.f32.mrb[0].mxu0
    %v581 = vadd.f32 %v63, %v580
    %v582 = vpop.f32.mrb[0].mxu0
    %583 = vdwg.mxu0
    %v584 = vpack.c.bf16 %v578, %v578
    %v585 = vpack.c.bf16 %v581, %v581
    %v587 = vsel %vm145, %v584, 0
    %589 = vmatprep.subr.bf16.mxu0 0
    %590 = vmatpush1.bf16.msra.mxu0 %v587
    %591 = vmatprep.subr.bf16.mxu0 0
    %592 = vmatpush1.bf16.msra.mxu0 0
    %593 = vmatprep.subr.bf16.mxu0 0
    %594 = vmatpush1.bf16.msra.mxu0 0
    %595 = vmatprep.subr.bf16.mxu0 0
    %596 = vmatpush1.bf16.msra.mxu0 0
    %597 = vmatprep.subr.bf16.mxu0 0
    %598 = vmatpush1.bf16.msra.mxu0 0
    %599 = vmatprep.subr.bf16.mxu0 0
    %600 = vmatpush1.bf16.msra.mxu0 0
    %601 = vmatprep.subr.bf16.mxu0 0
    %602 = vmatpush1.bf16.msra.mxu0 0
    %603 = vmatprep.subr.bf16.mxu0 0
    %604 = vmatpush1.bf16.msra.mxu0 0
    %605 = vmatprep.subr.bf16.mxu0 0
    %606 = vmatpush1.bf16.msra.mxu0 0
    %607 = vmatprep.subr.bf16.mxu0 0
    %608 = vmatpush1.bf16.msra.mxu0 0
    %609 = vmatprep.subr.bf16.mxu0 0
    %610 = vmatpush1.bf16.msra.mxu0 0
    %611 = vmatprep.subr.bf16.mxu0 0
    %612 = vmatpush1.bf16.msra.mxu0 0
    %613 = vmatprep.subr.bf16.mxu0 0
    %614 = vmatpush1.bf16.msra.mxu0 0
    %615 = vmatprep.subr.bf16.mxu0 0
    %616 = vmatpush1.bf16.msra.mxu0 0
    %617 = vmatprep.subr.bf16.mxu0 0
    %618 = vmatpush1.bf16.msra.mxu0 0
    %619 = vmatprep.subr.bf16.mxu0 0
    %620 = vmatpush1.bf16.msra.mxu0 0
    %621 = vmatprep.mubr.bf16.mxu0 0
    %622 = vmatmul.mubr.bf16.gmra.mrb[0].mxu0 %v143
    %v623 = vpop.f32.mrb[0].mxu0
    %v624 = vadd.f32 0.0, %v623
    %v625 = vpop.f32.mrb[0].mxu0
    %v626 = vpop.f32.mrb[0].mxu0
    %v627 = vpop.f32.mrb[0].mxu0
    %628 = vdwg.mxu0
    %v630 = vsel %vm145, %v585, 0
    %632 = vmatprep.subr.bf16.mxu0 0
    %633 = vmatpush1.bf16.msra.mxu0 %v630
    %634 = vmatprep.subr.bf16.mxu0 0
    %635 = vmatpush1.bf16.msra.mxu0 0
    %636 = vmatprep.subr.bf16.mxu0 0
    %637 = vmatpush1.bf16.msra.mxu0 0
    %638 = vmatprep.subr.bf16.mxu0 0
    %639 = vmatpush1.bf16.msra.mxu0 0
    %640 = vmatprep.subr.bf16.mxu0 0
    %641 = vmatpush1.bf16.msra.mxu0 0
    %642 = vmatprep.subr.bf16.mxu0 0
    %643 = vmatpush1.bf16.msra.mxu0 0
    %644 = vmatprep.subr.bf16.mxu0 0
    %645 = vmatpush1.bf16.msra.mxu0 0
    %646 = vmatprep.subr.bf16.mxu0 0
    %647 = vmatpush1.bf16.msra.mxu0 0
    %648 = vmatprep.subr.bf16.mxu0 0
    %649 = vmatpush1.bf16.msra.mxu0 0
    %650 = vmatprep.subr.bf16.mxu0 0
    %651 = vmatpush1.bf16.msra.mxu0 0
    %652 = vmatprep.subr.bf16.mxu0 0
    %653 = vmatpush1.bf16.msra.mxu0 0
    %654 = vmatprep.subr.bf16.mxu0 0
    %655 = vmatpush1.bf16.msra.mxu0 0
    %656 = vmatprep.subr.bf16.mxu0 0
    %657 = vmatpush1.bf16.msra.mxu0 0
    %658 = vmatprep.subr.bf16.mxu0 0
    %659 = vmatpush1.bf16.msra.mxu0 0
    %660 = vmatprep.subr.bf16.mxu0 0
    %661 = vmatpush1.bf16.msra.mxu0 0
    %662 = vmatprep.subr.bf16.mxu0 0
    %663 = vmatpush1.bf16.msra.mxu0 0
    %664 = vmatprep.mubr.bf16.mxu0 0
    %665 = vmatmul.mubr.bf16.gmra.mrb[0].mxu0 %v190
    %v666 = vpop.f32.mrb[0].mxu0
    %v667 = vadd.f32 0.0, %v666
    %v668 = vpop.f32.mrb[0].mxu0
    %v669 = vpop.f32.mrb[0].mxu0
    %v670 = vpop.f32.mrb[0].mxu0
    %671 = vdwg.mxu0
    %673 = vrot.lane.b32.xlu0 %v584, 96
    %v674 = vpop.permute.xlu0 %673
    %v676 = vsel %vm145, %v674, 0
    %678 = vmatprep.subr.bf16.mxu0 0
    %679 = vmatpush1.bf16.msra.mxu0 %v676
    %680 = vmatprep.subr.bf16.mxu0 0
    %681 = vmatpush1.bf16.msra.mxu0 0
    %682 = vmatprep.subr.bf16.mxu0 0
    %683 = vmatpush1.bf16.msra.mxu0 0
    %684 = vmatprep.subr.bf16.mxu0 0
    %685 = vmatpush1.bf16.msra.mxu0 0
    %686 = vmatprep.subr.bf16.mxu0 0
    %687 = vmatpush1.bf16.msra.mxu0 0
    %688 = vmatprep.subr.bf16.mxu0 0
    %689 = vmatpush1.bf16.msra.mxu0 0
    %690 = vmatprep.subr.bf16.mxu0 0
    %691 = vmatpush1.bf16.msra.mxu0 0
    %692 = vmatprep.subr.bf16.mxu0 0
    %693 = vmatpush1.bf16.msra.mxu0 0
    %694 = vmatprep.subr.bf16.mxu0 0
    %695 = vmatpush1.bf16.msra.mxu0 0
    %696 = vmatprep.subr.bf16.mxu0 0
    %697 = vmatpush1.bf16.msra.mxu0 0
    %698 = vmatprep.subr.bf16.mxu0 0
    %699 = vmatpush1.bf16.msra.mxu0 0
    %700 = vmatprep.subr.bf16.mxu0 0
    %701 = vmatpush1.bf16.msra.mxu0 0
    %702 = vmatprep.subr.bf16.mxu0 0
    %703 = vmatpush1.bf16.msra.mxu0 0
    %704 = vmatprep.subr.bf16.mxu0 0
    %705 = vmatpush1.bf16.msra.mxu0 0
    %706 = vmatprep.subr.bf16.mxu0 0
    %707 = vmatpush1.bf16.msra.mxu0 0
    %708 = vmatprep.subr.bf16.mxu0 0
    %709 = vmatpush1.bf16.msra.mxu0 0
    %710 = vmatprep.mubr.bf16.mxu0 0
    %711 = vmatmul.mubr.bf16.gmra.mrb[0].mxu0 %v239
    %v712 = vpop.f32.mrb[0].mxu0
    %v713 = vadd.f32 0.0, %v712
    %v714 = vpop.f32.mrb[0].mxu0
    %v715 = vpop.f32.mrb[0].mxu0
    %v716 = vpop.f32.mrb[0].mxu0
    %717 = vdwg.mxu0
    %719 = vrot.lane.b32.xlu0 %v585, 96
    %v720 = vpop.permute.xlu0 %719
    %v722 = vsel %vm145, %v720, 0
    %724 = vmatprep.subr.bf16.mxu0 0
    %725 = vmatpush1.bf16.msra.mxu0 %v722
    %726 = vmatprep.subr.bf16.mxu0 0
    %727 = vmatpush1.bf16.msra.mxu0 0
    %728 = vmatprep.subr.bf16.mxu0 0
    %729 = vmatpush1.bf16.msra.mxu0 0
    %730 = vmatprep.subr.bf16.mxu0 0
    %731 = vmatpush1.bf16.msra.mxu0 0
    %732 = vmatprep.subr.bf16.mxu0 0
    %733 = vmatpush1.bf16.msra.mxu0 0
    %734 = vmatprep.subr.bf16.mxu0 0
    %735 = vmatpush1.bf16.msra.mxu0 0
    %736 = vmatprep.subr.bf16.mxu0 0
    %737 = vmatpush1.bf16.msra.mxu0 0
    %738 = vmatprep.subr.bf16.mxu0 0
    %739 = vmatpush1.bf16.msra.mxu0 0
    %740 = vmatprep.subr.bf16.mxu0 0
    %741 = vmatpush1.bf16.msra.mxu0 0
    %742 = vmatprep.subr.bf16.mxu0 0
    %743 = vmatpush1.bf16.msra.mxu0 0
    %744 = vmatprep.subr.bf16.mxu0 0
    %745 = vmatpush1.bf16.msra.mxu0 0
    %746 = vmatprep.subr.bf16.mxu0 0
    %747 = vmatpush1.bf16.msra.mxu0 0
    %748 = vmatprep.subr.bf16.mxu0 0
    %749 = vmatpush1.bf16.msra.mxu0 0
    %750 = vmatprep.subr.bf16.mxu0 0
    %751 = vmatpush1.bf16.msra.mxu0 0
    %752 = vmatprep.subr.bf16.mxu0 0
    %753 = vmatpush1.bf16.msra.mxu0 0
    %754 = vmatprep.subr.bf16.mxu0 0
    %755 = vmatpush1.bf16.msra.mxu0 0
    %756 = vmatprep.mubr.bf16.mxu0 0
    %757 = vmatmul.mubr.bf16.gmra.mrb[0].mxu0 %v288
    %v758 = vpop.f32.mrb[0].mxu0
    %v759 = vadd.f32 0.0, %v758
    %v760 = vpop.f32.mrb[0].mxu0
    %v761 = vpop.f32.mrb[0].mxu0
    %v762 = vpop.f32.mrb[0].mxu0
    %763 = vdwg.mxu0
    %v764 = vpack.c.bf16 %v667, %v624
    %v765 = vpack.c.bf16 %v759, %v713
    %767 = vrot.lane.b32.xlu0 %v765, 32
    %v768 = vpop.permute.xlu0 %767
    %v771 = vsel %vm94, %v764, %v768
    %v773 = vsel %vm344, %v771, %v536
    %v774 = vsel %vm383, %v773, 0
    %776 = vmatprep.subr.bf16.mxu0 0
    %777 = vmatpush1.bf16.msra.mxu0 %v371
    %778 = vmatprep.subr.bf16.mxu0 0
    %779 = vmatpush1.bf16.msra.mxu0 %v372
    %780 = vmatprep.subr.bf16.mxu0 0
    %781 = vmatpush1.bf16.msra.mxu0 %v373
    %782 = vmatprep.subr.bf16.mxu0 0
    %783 = vmatpush1.bf16.msra.mxu0 %v374
    %784 = vmatprep.subr.bf16.mxu0 0
    %785 = vmatpush1.bf16.msra.mxu0 %v375
    %786 = vmatprep.subr.bf16.mxu0 0
    %787 = vmatpush1.bf16.msra.mxu0 %v376
    %788 = vmatprep.subr.bf16.mxu0 0
    %789 = vmatpush1.bf16.msra.mxu0 0
    %790 = vmatprep.subr.bf16.mxu0 0
    %791 = vmatpush1.bf16.msra.mxu0 0
    %792 = vmatprep.subr.bf16.mxu0 0
    %793 = vmatpush1.bf16.msra.mxu0 0
    %794 = vmatprep.subr.bf16.mxu0 0
    %795 = vmatpush1.bf16.msra.mxu0 0
    %796 = vmatprep.subr.bf16.mxu0 0
    %797 = vmatpush1.bf16.msra.mxu0 0
    %798 = vmatprep.subr.bf16.mxu0 0
    %799 = vmatpush1.bf16.msra.mxu0 0
    %800 = vmatprep.subr.bf16.mxu0 0
    %801 = vmatpush1.bf16.msra.mxu0 0
    %802 = vmatprep.subr.bf16.mxu0 0
    %803 = vmatpush1.bf16.msra.mxu0 0
    %804 = vmatprep.subr.bf16.mxu0 0
    %805 = vmatpush1.bf16.msra.mxu0 0
    %806 = vmatprep.subr.bf16.mxu0 0
    %807 = vmatpush1.bf16.msra.mxu0 0
    %808 = vmatprep.mubr.bf16.mxu0 0
    %809 = vmatmul.mubr.bf16.gmra.mrb[0].mxu0 %v774
    %v810 = vpop.f32.mrb[0].mxu0
    %v811 = vadd.f32 %v70, %v810
    %v812 = vpop.f32.mrb[0].mxu0
    %v813 = vpop.f32.mrb[0].mxu0
    %v814 = vadd.f32 %v70, %v813
    %v815 = vpop.f32.mrb[0].mxu0
    %816 = vdwg.mxu0
    %817 = vmatprep.subr.bf16.mxu0 0
    %818 = vmatpush1.bf16.msra.mxu0 %v435
    %819 = vmatprep.subr.bf16.mxu0 0
    %820 = vmatpush1.bf16.msra.mxu0 %v436
    %821 = vmatprep.subr.bf16.mxu0 0
    %822 = vmatpush1.bf16.msra.mxu0 0
    %823 = vmatprep.subr.bf16.mxu0 0
    %824 = vmatpush1.bf16.msra.mxu0 0
    %825 = vmatprep.subr.bf16.mxu0 0
    %826 = vmatpush1.bf16.msra.mxu0 0
    %827 = vmatprep.subr.bf16.mxu0 0
    %828 = vmatpush1.bf16.msra.mxu0 0
    %829 = vmatprep.subr.bf16.mxu0 0
    %830 = vmatpush1.bf16.msra.mxu0 0
    %831 = vmatprep.subr.bf16.mxu0 0
    %832 = vmatpush1.bf16.msra.mxu0 0
    %833 = vmatprep.subr.bf16.mxu0 0
    %834 = vmatpush1.bf16.msra.mxu0 0
    %835 = vmatprep.subr.bf16.mxu0 0
    %836 = vmatpush1.bf16.msra.mxu0 0
    %837 = vmatprep.subr.bf16.mxu0 0
    %838 = vmatpush1.bf16.msra.mxu0 0
    %839 = vmatprep.subr.bf16.mxu0 0
    %840 = vmatpush1.bf16.msra.mxu0 0
    %841 = vmatprep.subr.bf16.mxu0 0
    %842 = vmatpush1.bf16.msra.mxu0 0
    %843 = vmatprep.subr.bf16.mxu0 0
    %844 = vmatpush1.bf16.msra.mxu0 0
    %845 = vmatprep.subr.bf16.mxu0 0
    %846 = vmatpush1.bf16.msra.mxu0 0
    %847 = vmatprep.subr.bf16.mxu0 0
    %848 = vmatpush1.bf16.msra.mxu0 0
    %849 = vmatprep.mubr.bf16.mxu0 0
    %850 = vmatmul.mubr.bf16.gmra.mrb[0].mxu0 %v541
    %v851 = vpop.f32.mrb[0].mxu0
    %v852 = vadd.f32 %v77, %v851
    %v853 = vpop.f32.mrb[0].mxu0
    %v854 = vpop.f32.mrb[0].mxu0
    %v855 = vadd.f32 %v77, %v854
    %v856 = vpop.f32.mrb[0].mxu0
    %857 = vdwg.mxu0
    %v858 = vxor.u32 %v811, 2147483648
    %v859 = vxor.u32 %v814, 2147483648
    %v860 = vmul.f32 %v858, 1.442695
    %v861 = vpow.pop %v860
    %v862 = vmul.f32 %v859, 1.442695
    %v863 = vpow.pop %v862
    %v864 = vadd.f32 %v861, 1.0
    %v865 = vadd.f32 %v863, 1.0
    %v866 = vrcp.pop %v864
    %v867 = vmul.f32 1.0, %v866
    %v868 = vrcp.pop %v865
    %v869 = vmul.f32 1.0, %v868
    %v870 = vmul.f32 %v867, %v852
    %v871 = vmul.f32 %v869, %v855
    %874 = vrot.lane.b32.xlu0 %v870, 64
    %v875 = vpop.permute.xlu0 %874
    %876 = vrot.lane.b32.xlu0 %v871, 64
    %v877 = vpop.permute.xlu0 %876
    %v880 = vadd.f32 %v811, %v875
    %v881 = vadd.f32 %v814, %v877
    %v882 = vtanh.pop %v880
    %v883 = vtanh.pop %v881
    %v884 = vsub.f32 %v534, %v882
    %v885 = vsub.f32 %v535, %v883
    %888 = vrot.lane.b32.xlu0 %v884, 96
    %v889 = vpop.permute.xlu0 %888
    %890 = vrot.lane.b32.xlu0 %v885, 96
    %v891 = vpop.permute.xlu0 %890
    %v894 = vmul.f32 %v867, %v889
    %v895 = vmul.f32 %v869, %v891
    %898 = vrot.lane.b32.xlu0 %v894, 32
    %v899 = vpop.permute.xlu0 %898
    %900 = vrot.lane.b32.xlu0 %v895, 32
    %v901 = vpop.permute.xlu0 %900
    %v904 = vadd.f32 %v882, %v899
    %v905 = vadd.f32 %v883, %v901
    %908 = vrot.lane.b32.xlu0 %v904, 64
    %v909 = vpop.permute.xlu0 %908
    %910 = vrot.lane.b32.xlu0 %v905, 64
    %v911 = vpop.permute.xlu0 %910
    %914 = vst.msk [vmem:[#allocation2] sm:$0xff] %vm94, %v909
    %915 = vst.msk [vmem:[#allocation2 + $0x8] sm:$0xff] %vm94, %v911
    // Predicated region
    $region38: #{g2sr_forward.1} parent=1 // pred_check
      _
    $region39: #{g2sr_forward.1} parent=1 // pred_check_branch
      %917 = sbr.rel (0) target = $region41
    $region40: #{g2sr_forward.1} parent=1 // pred_region
      %s919 = ssub.s32 256, 256
      %920 = vsyncadd [#allocation3], %s919
      %s921 = sshll.u32 [#allocation2], 4
      %s922 = int_to_ptr.vmem [resolvable:$true] %s921
      %927 = dma.vmem_to_hbm [thread:$0]  %s922, 256, %s9, [#allocation3], 128, 128, 8
    $region41: #{g2sr_forward.1} parent=1 // pred_fallthru
      _
    // Predicated region
    $region42: #{g2sr_forward.1} parent=1 // pred_check
      _
    $region43: #{g2sr_forward.1} parent=1 // pred_check_branch
      %929 = sbr.rel (0) target = $region45
    $region44: #{g2sr_forward.1} parent=1 // pred_region
      %930 = dma.done [#allocation3], 256
    $region45: #{g2sr_forward.1} parent=1 // pred_fallthru
      _
    %931 = vsyncpa [#allocation3], 1

</llo_original>
